<compile_context>
chip_gen: v6e
topology: v6e:2x2x1
jax: 0.10.0
libtpu: 0.0.40
codegen_flags: <defaults>
</compile_context>

<pallas_src>
import functools

import jax
import jax.numpy as jnp
from jax.experimental import pallas as pl
from jax.experimental.pallas import tpu as pltpu

BN_EPS = 1e-5
LEAKY_SLOPE = 0.2
LANES = 128
# Rows inside the packed per-layer vector operand.
ROW_BIAS, ROW_GAMMA, ROW_BETA = 0, 1, 2


def _round_up(n, m):
    return ((n + m - 1) // m) * m


# ---------------------------------------------------------------------------
# Kernel
# ---------------------------------------------------------------------------
def _fc_block(h, w_ref, v_ref, inv_b):
    """Linear -> LeakyReLU(0.2) -> BatchNorm1d (train mode) on a VMEM-resident batch.

    w_ref is (in, out_padded); v_ref is (8, out_padded) with rows
    [bias, gamma, beta, 0...]. Padded lanes carry zeros end-to-end (bias/gamma/beta
    padded with 0), so every op below is an unmasked full-vreg op.
    """
    w = w_ref[...]
    # Linear. h is cast to the weight dtype only for the MXU operands (f32 or bf16);
    # everything downstream accumulates / normalizes in f32.
    y = jnp.dot(h.astype(w.dtype), w, preferred_element_type=jnp.float32)
    y = y + v_ref[ROW_BIAS:ROW_BIAS + 1, :]
    # LeakyReLU(0.2)
    y = jnp.where(y >= 0, y, LEAKY_SLOPE * y)
    # BatchNorm1d batch stats: two plain cross-sublane reductions (no lane-concat
    # copy) and two-pass variance E[(y - mean)^2] for accuracy.
    mean = jnp.sum(y, axis=0, keepdims=True) * inv_b
    d = y - mean
    var = jnp.sum(d * d, axis=0, keepdims=True) * inv_b
    # Folded normalize + affine: (y - mean) * (gamma * rstd) + beta
    # -> one mul + one add per element (gamma padded with 0 keeps padded lanes 0).
    s = v_ref[ROW_GAMMA:ROW_GAMMA + 1, :] * jax.lax.rsqrt(var + BN_EPS)
    return d * s + v_ref[ROW_BETA:ROW_BETA + 1, :]


def encoder_fc_kernel(x_ref, w1_ref, v1_ref, w2_ref, v2_ref, wh_ref, bh_ref, out_ref):
    h = x_ref[...].astype(jnp.float32)
    inv_b = jnp.float32(1.0 / h.shape[0])
    h = _fc_block(h, w1_ref, v1_ref, inv_b)
    h = _fc_block(h, w2_ref, v2_ref, inv_b)
    # Fused mu / log_var head: single matmul, single lane-dense (B, 128) store.
    wh = wh_ref[...]
    out_ref[...] = (
        jnp.dot(h.astype(wh.dtype), wh, preferred_element_type=jnp.float32)
        + bh_ref[...]
    ).astype(out_ref.dtype)


# ---------------------------------------------------------------------------
# One-time parameter preparation (transpose + pad + pack + head fusion)
# ---------------------------------------------------------------------------
def prepare_params(params, in_W, hidden_dims, latent_dim, use_bf16=False):
    """Transpose Linear weights to (in, out), zero-pad feature dims to 128 lanes,
    pack per-layer (bias, gamma, beta) into one (8, out_pad) array, and fuse
    fc_mu / fc_var into one (hidden_pad, 128*k) head.

    Zero padding is exact: padded lanes stay identically 0 through
    Linear -> LeakyReLU -> BatchNorm because bias / gamma / beta pad with 0.
    Set use_bf16=True to store matmul weights in bf16 (halves weight DMA bytes and
    doubles MXU issue rate; introduces ~1e-3 relative error, so off for toy checks).
    """
    h1, h2 = hidden_dims
    h1p = _round_up(h1, LANES)
    h2p = _round_up(h2, LANES)
    head_p = _round_up(2 * latent_dim, LANES)
    w_dtype = jnp.bfloat16 if use_bf16 else jnp.float32

    def pack_rows(vecs, out_pad):
        rows = [jnp.pad(v, (0, out_pad - v.shape[0])) for v in vecs]
        packed = jnp.stack(rows, axis=0)                      # (3, out_pad)
        return jnp.pad(packed, ((0, 8 - packed.shape[0]), (0, 0)))  # (8, out_pad)

    # w1: (out, in) -> (in_W, h1p)   (contraction dim matches unpadded x)
    w1 = jnp.pad(jnp.transpose(params["w1"]), ((0, 0), (0, h1p - h1)))
    # w2: (out, in) -> (h1p, h2p)
    w2 = jnp.pad(jnp.transpose(params["w2"]), ((0, h1p - h1), (0, h2p - h2)))
    # fused head: cols [0:L) = mu, [L:2L) = log_var, rest zero
    wh = jnp.concatenate(
        [jnp.transpose(params["wmu"]), jnp.transpose(params["wvar"])], axis=1
    )
    wh = jnp.pad(wh, ((0, h2p - h2), (0, head_p - 2 * latent_dim)))
    bh = jnp.concatenate([params["bmu"], params["bvar"]])
    bh = jnp.pad(bh, (0, head_p - 2 * latent_dim)).reshape(1, -1)

    return {
        "w1": w1.astype(w_dtype),
        "v1": pack_rows([params["b1"], params["g1"], params["be1"]], h1p),
        "w2": w2.astype(w_dtype),
        "v2": pack_rows([params["b2"], params["g2"], params["be2"]], h2p),
        "wh": wh.astype(w_dtype),
        "bh": bh,
    }


# ---------------------------------------------------------------------------
# Forward wrapper
# ---------------------------------------------------------------------------
@functools.partial(jax.jit, static_argnames=("latent_dim",))
def encoder_fc_forward(x, prepared, latent_dim):
    B = x.shape[0]
    if B < 2:
        # Training-mode BatchNorm1d needs >1 sample (PyTorch raises here too).
        raise ValueError("EncoderFC BatchNorm1d requires batch size > 1")
    head_p = prepared["wh"].shape[1]

    args = (
        x,
        prepared["w1"], prepared["v1"],
        prepared["w2"], prepared["v2"],
        prepared["wh"], prepared["bh"],
    )

    # Footprint-derived scoped-VMEM limit (explicit so scaling B / hidden dims is
    # safe against v5e's 16 MiB and v7x's 32 MiB scoped defaults).
    footprint = sum(int(a.size) * a.dtype.itemsize for a in args) + B * head_p * 4
    vmem_limit = int(min(max(4 << 20, footprint * 8), 32 << 20))

    vmem = pl.BlockSpec(memory_space=pltpu.MemorySpace.VMEM)
    # No grid: BatchNorm reduces over the full batch and the whole working set
    # (a few hundred KiB at these shapes) is fully VMEM-resident.
    out = pl.pallas_call(
        encoder_fc_kernel,
        out_shape=jax.ShapeDtypeStruct((B, head_p), jnp.float32),
        in_specs=[vmem] * len(args),
        out_specs=vmem,
        compiler_params=pltpu.CompilerParams(vmem_limit_bytes=vmem_limit),
    )(*args)

    mu = out[:, :latent_dim]
    log_var = out[:, latent_dim:2 * latent_dim]
    return [mu, log_var]


# ---------------------------------------------------------------------------
# PyTorch-style init + pure-JAX reference
# ---------------------------------------------------------------------------
def init_params(key, in_W, hidden_dims, latent_dim):
    """Deterministic synthetic init mimicking the PyTorch module's shapes
    (weights stored PyTorch-style (out, in); transposed/padded once later)."""
    assert len(hidden_dims) == 2, "this script instantiates hidden_dims of length 2"
    ks = jax.random.split(key, 8)

    def linear(kw, kb, fan_in, fan_out):
        bound = 1.0 / jnp.sqrt(fan_in)
        w = jax.random.uniform(kw, (fan_out, fan_in), jnp.float32, -bound, bound)
        b = jax.random.uniform(kb, (fan_out,), jnp.float32, -bound, bound)
        return w, b

    w1, b1 = linear(ks[0], ks[1], in_W, hidden_dims[0])
    w2, b2 = linear(ks[2], ks[3], hidden_dims[0], hidden_dims[1])
    wmu, bmu = linear(ks[4], ks[5], hidden_dims[1], latent_dim)
    wvar, bvar = linear(ks[6], ks[7], hidden_dims[1], latent_dim)

    return {
        "w1": w1, "b1": b1,
        "g1": jnp.ones((hidden_dims[0],), jnp.float32),
        "be1": jnp.zeros((hidden_dims[0],), jnp.float32),
        "w2": w2, "b2": b2,
        "g2": jnp.ones((hidden_dims[1],), jnp.float32),
        "be2": jnp.zeros((hidden_dims[1],), jnp.float32),
        "wmu": wmu, "bmu": bmu,
        "wvar": wvar, "bvar": bvar,
    }


def reference_forward(x, params):
    """Pure-JAX reference of the PyTorch forward (training-mode BatchNorm1d)."""
    def block(h, w, b, g, be):
        y = h @ w.T + b
        y = jnp.where(y >= 0, y, LEAKY_SLOPE * y)
        mean = jnp.mean(y, axis=0, keepdims=True)
        var = jnp.mean((y - mean) ** 2, axis=0, keepdims=True)
        return (y - mean) / jnp.sqrt(var + BN_EPS) * g + be

    h = block(x, params["w1"], params["b1"], params["g1"], params["be1"])
    h = block(h, params["w2"], params["b2"], params["g2"], params["be2"])
    return [h @ params["wmu"].T + params["bmu"], h @ params["wvar"].T + params["bvar"]]


if __name__ == "__main__":
    B, in_W = 8, 32
    hidden_dims = [64, 32]
    latent_dim = 16

    key = jax.random.PRNGKey(0)
    kx, kp = jax.random.split(key)
    x = jax.random.normal(kx, (B, in_W), jnp.float32)
    params = init_params(kp, in_W, hidden_dims, latent_dim)

    # One-time setup (transpose + pad + pack + head fusion); NOT in the per-call path.
    # use_bf16=False keeps exact-ish f32 matmuls for the 1e-4 tolerance check;
    # flip to True when hidden dims grow (512-1024) and accuracy budget allows.
    prepared = jax.block_until_ready(
        prepare_params(params, in_W, hidden_dims, latent_dim, use_bf16=False)
    )

    mu, log_var = encoder_fc_forward(x, prepared, latent_dim)
    jax.block_until_ready((mu, log_var))

    mu_ref, lv_ref = reference_forward(x, params)
    assert mu.shape == (B, latent_dim) and log_var.shape == (B, latent_dim)
    assert jnp.allclose(mu, mu_ref, atol=1e-4, rtol=1e-4)
    assert jnp.allclose(log_var, lv_ref, atol=1e-4, rtol=1e-4)

    print("KERNEL_OK")
</pallas_src>

<mosaic_0001>
module attributes {stable_mosaic.version = 11 : i64} {
  func.func @encoder_fc_kernel(%arg0: memref<8x32xf32, #tpu.memory_space<vmem>>, %arg1: memref<32x128xf32, #tpu.memory_space<vmem>>, %arg2: memref<8x128xf32, #tpu.memory_space<vmem>>, %arg3: memref<128x128xf32, #tpu.memory_space<vmem>>, %arg4: memref<8x128xf32, #tpu.memory_space<vmem>>, %arg5: memref<128x128xf32, #tpu.memory_space<vmem>>, %arg6: memref<1x128xf32, #tpu.memory_space<vmem>>, %arg7: memref<8x128xf32, #tpu.memory_space<vmem>>) attributes {dimension_semantics = [], scalar_prefetch = 0 : i64, scratch_operands = 0 : i64, tpu.core_type = #tpu.core_type<tc>} {
    %c0 = arith.constant 0 : index
    %c0_0 = arith.constant 0 : index
    %0 = vector.load %arg0[%c0, %c0_0] : memref<8x32xf32, #tpu.memory_space<vmem>>, vector<8x32xf32>
    %c0_1 = arith.constant 0 : index
    %c0_2 = arith.constant 0 : index
    %1 = vector.load %arg1[%c0_1, %c0_2] : memref<32x128xf32, #tpu.memory_space<vmem>>, vector<32x128xf32>
    %cst = arith.constant dense<0.000000e+00> : vector<8x128xf32>
    %2 = tpu.matmul %0, %1, %cst {dimension_numbers = #tpu.dot_dimension_numbers<[1], [0], [0], [1], [0, 0, 1, 1], [], []>} : vector<8x32xf32>, vector<32x128xf32>, vector<8x128xf32> -> vector<8x128xf32>
    %c0_3 = arith.constant 0 : index
    %c0_4 = arith.constant 0 : index
    %3 = vector.load %arg2[%c0_3, %c0_4] : memref<8x128xf32, #tpu.memory_space<vmem>>, vector<1x128xf32>
    %4 = vector.broadcast %3 : vector<1x128xf32> to vector<8x128xf32>
    %5 = arith.addf %2, %4 : vector<8x128xf32>
    %cst_5 = arith.constant 0.000000e+00 : f32
    %6 = vector.broadcast %cst_5 : f32 to vector<8x128xf32>
    %7 = arith.cmpf oge, %5, %6 : vector<8x128xf32>
    %cst_6 = arith.constant 2.000000e-01 : f32
    %8 = vector.broadcast %cst_6 : f32 to vector<8x128xf32>
    %9 = arith.mulf %8, %5 : vector<8x128xf32>
    %10 = arith.select %7, %5, %9 : vector<8x128xi1>, vector<8x128xf32>
    %cst_7 = arith.constant dense<0.000000e+00> : vector<128xf32>
    %11 = vector.multi_reduction <add>, %10, %cst_7 [0] : vector<8x128xf32> to vector<128xf32>
    %12 = vector.shape_cast %11 : vector<128xf32> to vector<1x128xf32>
    %cst_8 = arith.constant 1.250000e-01 : f32
    %13 = vector.broadcast %cst_8 : f32 to vector<1x128xf32>
    %14 = arith.mulf %12, %13 : vector<1x128xf32>
    %15 = vector.broadcast %14 : vector<1x128xf32> to vector<8x128xf32>
    %16 = arith.subf %10, %15 : vector<8x128xf32>
    %17 = arith.mulf %16, %16 : vector<8x128xf32>
    %cst_9 = arith.constant dense<0.000000e+00> : vector<128xf32>
    %18 = vector.multi_reduction <add>, %17, %cst_9 [0] : vector<8x128xf32> to vector<128xf32>
    %19 = vector.shape_cast %18 : vector<128xf32> to vector<1x128xf32>
    %cst_10 = arith.constant 1.250000e-01 : f32
    %20 = vector.broadcast %cst_10 : f32 to vector<1x128xf32>
    %21 = arith.mulf %19, %20 : vector<1x128xf32>
    %c1 = arith.constant 1 : index
    %c0_11 = arith.constant 0 : index
    %22 = vector.load %arg2[%c1, %c0_11] : memref<8x128xf32, #tpu.memory_space<vmem>>, vector<1x128xf32>
    %cst_12 = arith.constant 9.99999974E-6 : f32
    %23 = vector.broadcast %cst_12 : f32 to vector<1x128xf32>
    %24 = arith.addf %21, %23 : vector<1x128xf32>
    %25 = math.rsqrt %24 : vector<1x128xf32>
    %26 = arith.mulf %22, %25 : vector<1x128xf32>
    %27 = vector.broadcast %26 : vector<1x128xf32> to vector<8x128xf32>
    %28 = arith.mulf %16, %27 : vector<8x128xf32>
    %c2 = arith.constant 2 : index
    %c0_13 = arith.constant 0 : index
    %29 = vector.load %arg2[%c2, %c0_13] : memref<8x128xf32, #tpu.memory_space<vmem>>, vector<1x128xf32>
    %30 = vector.broadcast %29 : vector<1x128xf32> to vector<8x128xf32>
    %31 = arith.addf %28, %30 : vector<8x128xf32>
    %c0_14 = arith.constant 0 : index
    %c0_15 = arith.constant 0 : index
    %32 = vector.load %arg3[%c0_14, %c0_15] : memref<128x128xf32, #tpu.memory_space<vmem>>, vector<128x128xf32>
    %cst_16 = arith.constant dense<0.000000e+00> : vector<8x128xf32>
    %33 = tpu.matmul %31, %32, %cst_16 {dimension_numbers = #tpu.dot_dimension_numbers<[1], [0], [0], [1], [0, 0, 1, 1], [], []>} : vector<8x128xf32>, vector<128x128xf32>, vector<8x128xf32> -> vector<8x128xf32>
    %c0_17 = arith.constant 0 : index
    %c0_18 = arith.constant 0 : index
    %34 = vector.load %arg4[%c0_17, %c0_18] : memref<8x128xf32, #tpu.memory_space<vmem>>, vector<1x128xf32>
    %35 = vector.broadcast %34 : vector<1x128xf32> to vector<8x128xf32>
    %36 = arith.addf %33, %35 : vector<8x128xf32>
    %cst_19 = arith.constant 0.000000e+00 : f32
    %37 = vector.broadcast %cst_19 : f32 to vector<8x128xf32>
    %38 = arith.cmpf oge, %36, %37 : vector<8x128xf32>
    %cst_20 = arith.constant 2.000000e-01 : f32
    %39 = vector.broadcast %cst_20 : f32 to vector<8x128xf32>
    %40 = arith.mulf %39, %36 : vector<8x128xf32>
    %41 = arith.select %38, %36, %40 : vector<8x128xi1>, vector<8x128xf32>
    %cst_21 = arith.constant dense<0.000000e+00> : vector<128xf32>
    %42 = vector.multi_reduction <add>, %41, %cst_21 [0] : vector<8x128xf32> to vector<128xf32>
    %43 = vector.shape_cast %42 : vector<128xf32> to vector<1x128xf32>
    %cst_22 = arith.constant 1.250000e-01 : f32
    %44 = vector.broadcast %cst_22 : f32 to vector<1x128xf32>
    %45 = arith.mulf %43, %44 : vector<1x128xf32>
    %46 = vector.broadcast %45 : vector<1x128xf32> to vector<8x128xf32>
    %47 = arith.subf %41, %46 : vector<8x128xf32>
    %48 = arith.mulf %47, %47 : vector<8x128xf32>
    %cst_23 = arith.constant dense<0.000000e+00> : vector<128xf32>
    %49 = vector.multi_reduction <add>, %48, %cst_23 [0] : vector<8x128xf32> to vector<128xf32>
    %50 = vector.shape_cast %49 : vector<128xf32> to vector<1x128xf32>
    %cst_24 = arith.constant 1.250000e-01 : f32
    %51 = vector.broadcast %cst_24 : f32 to vector<1x128xf32>
    %52 = arith.mulf %50, %51 : vector<1x128xf32>
    %c1_25 = arith.constant 1 : index
    %c0_26 = arith.constant 0 : index
    %53 = vector.load %arg4[%c1_25, %c0_26] : memref<8x128xf32, #tpu.memory_space<vmem>>, vector<1x128xf32>
    %cst_27 = arith.constant 9.99999974E-6 : f32
    %54 = vector.broadcast %cst_27 : f32 to vector<1x128xf32>
    %55 = arith.addf %52, %54 : vector<1x128xf32>
    %56 = math.rsqrt %55 : vector<1x128xf32>
    %57 = arith.mulf %53, %56 : vector<1x128xf32>
    %58 = vector.broadcast %57 : vector<1x128xf32> to vector<8x128xf32>
    %59 = arith.mulf %47, %58 : vector<8x128xf32>
    %c2_28 = arith.constant 2 : index
    %c0_29 = arith.constant 0 : index
    %60 = vector.load %arg4[%c2_28, %c0_29] : memref<8x128xf32, #tpu.memory_space<vmem>>, vector<1x128xf32>
    %61 = vector.broadcast %60 : vector<1x128xf32> to vector<8x128xf32>
    %62 = arith.addf %59, %61 : vector<8x128xf32>
    %c0_30 = arith.constant 0 : index
    %c0_31 = arith.constant 0 : index
    %63 = vector.load %arg5[%c0_30, %c0_31] : memref<128x128xf32, #tpu.memory_space<vmem>>, vector<128x128xf32>
    %cst_32 = arith.constant dense<0.000000e+00> : vector<8x128xf32>
    %64 = tpu.matmul %62, %63, %cst_32 {dimension_numbers = #tpu.dot_dimension_numbers<[1], [0], [0], [1], [0, 0, 1, 1], [], []>} : vector<8x128xf32>, vector<128x128xf32>, vector<8x128xf32> -> vector<8x128xf32>
    %c0_33 = arith.constant 0 : index
    %c0_34 = arith.constant 0 : index
    %65 = vector.load %arg6[%c0_33, %c0_34] : memref<1x128xf32, #tpu.memory_space<vmem>>, vector<1x128xf32>
    %66 = vector.broadcast %65 : vector<1x128xf32> to vector<8x128xf32>
    %67 = arith.addf %64, %66 : vector<8x128xf32>
    %c0_35 = arith.constant 0 : index
    %c0_36 = arith.constant 0 : index
    %68 = vector.load %arg7[%c0_35, %c0_36] : memref<8x128xf32, #tpu.memory_space<vmem>>, vector<8x128xf32>
    tpu.vector_store %arg7[%c0_35, %c0_36], %67 {strides = array<i32>} : memref<8x128xf32, #tpu.memory_space<vmem>>, vector<8x128xf32>,
    return
  }
}

</mosaic_0001>

<llo_original>
// kernel: encoder_fc_forward.1
$region0: #{encoder_fc_forward.1}
  #allocation0 [shape = 'u32[]', space=smem, size = 0x4, offset = 0x4, fixed_abs, tag = 'smem constant byte address 0x4 - core index']
  #allocation1 [shape = 'u32[144,128]{1,0:T(1,128)}', space=vmem, size = 0x12000, scoped, tag = 'internal scratch']
  %s0 = inlined_call_operand.hbm [shape: f32[8,32], index: 0, kind: input, shape index: {}]
  %s1 = inlined_call_operand.hbm [shape: f32[32,128], index: 1, kind: input, shape index: {}]
  %s2 = inlined_call_operand.hbm [shape: f32[8,128], index: 2, kind: input, shape index: {}]
  %s3 = inlined_call_operand.hbm [shape: f32[128,128], index: 3, kind: input, shape index: {}]
  %s4 = inlined_call_operand.hbm [shape: f32[8,128], index: 4, kind: input, shape index: {}]
  %s5 = inlined_call_operand.hbm [shape: f32[128,128], index: 5, kind: input, shape index: {}]
  %s6 = inlined_call_operand.vmem [shape: f32[1,128], index: 6, kind: input, shape index: {}]
  %s7 = inlined_call_operand.vmem [shape: f32[8,128], index: 7, kind: output, shape index: {}]
  %s8 = sld [smem:[#allocation0]]
  $region62: #{encoder_fc_forward.1} parent=0
    _
  %s10 = ssub.s32 1, %s8
  %s11 = scalar_select 0, %s10, %s8
  $region1: #{encoder_fc_forward.1} parent=0
    #allocation2 [shape = 'u8[4096]{0}', space=vmem, size = 0x1000, scoped, tag = 'input window, operand 0, single buffered']
    #allocation3 [shape = 's32[1]{0}', space=sflag, size = 0x4, scoped, tag = 'scoped memory for encoder_fc_forward.1']
    #allocation4 [shape = 'u8[16384]{0}', space=vmem, size = 0x4000, scoped, tag = 'input window, operand 1, single buffered']
    #allocation5 [shape = 's32[1]{0}', space=sflag, size = 0x4, scoped, tag = 'scoped memory for encoder_fc_forward.1']
    #allocation6 [shape = 'u8[4096]{0}', space=vmem, size = 0x1000, scoped, tag = 'input window, operand 2, single buffered']
    #allocation7 [shape = 'u8[65536]{0}', space=vmem, size = 0x10000, scoped, tag = 'input window, operand 3, single buffered']
    #allocation8 [shape = 's32[1]{0}', space=sflag, size = 0x4, scoped, tag = 'scoped memory for encoder_fc_forward.1']
    #allocation9 [shape = 'u8[4096]{0}', space=vmem, size = 0x1000, scoped, tag = 'input window, operand 4, single buffered']
    #allocation10 [shape = 'u8[65536]{0}', space=vmem, size = 0x10000, scoped, tag = 'input window, operand 5, single buffered']
    #allocation11 [shape = 's32[1]{0}', space=sflag, size = 0x4, scoped, tag = 'scoped memory for encoder_fc_forward.1']
    %12 = vsyncpa [#allocation3], 0
    %13 = vsyncpa [#allocation5], 0
    %14 = vsyncpa [#allocation8], 0
    %15 = vsyncpa [#allocation11], 0
    // Predicated region
    $region2: #{encoder_fc_forward.1} parent=1 // pred_check
      _
    $region3: #{encoder_fc_forward.1} parent=1 // pred_check_branch
      %17 = sbr.rel (0) target = $region5
    $region4: #{encoder_fc_forward.1} parent=1 // pred_region
      %s19 = ssub.s32 128, 128
      %20 = vsyncadd [#allocation3], %s19
      %s22 = sshll.u32 [#allocation2], 4
      %s23 = int_to_ptr.vmem [resolvable:$true] %s22
      %25 = dma.hbm_to_vmem [thread:$0]  %s0, 128, %s23, [#allocation3]
    $region5: #{encoder_fc_forward.1} parent=1 // pred_fallthru
      _
    // Predicated region
    $region6: #{encoder_fc_forward.1} parent=1 // pred_check
      _
    $region7: #{encoder_fc_forward.1} parent=1 // pred_check_branch
      %27 = sbr.rel (0) target = $region9
    $region8: #{encoder_fc_forward.1} parent=1 // pred_region
      %s29 = ssub.s32 512, 512
      %30 = vsyncadd [#allocation5], %s29
      %s31 = sshll.u32 [#allocation4], 4
      %s32 = int_to_ptr.vmem [resolvable:$true] %s31
      %37 = dma.hbm_to_vmem [thread:$0]  %s1, 512, %s32, [#allocation5], 128, 128, 8
    $region9: #{encoder_fc_forward.1} parent=1 // pred_fallthru
      _
    // Predicated region
    $region10: #{encoder_fc_forward.1} parent=1 // pred_check
      _
    $region11: #{encoder_fc_forward.1} parent=1 // pred_check_branch
      %39 = sbr.rel (0) target = $region13
    $region12: #{encoder_fc_forward.1} parent=1 // pred_region
      %s41 = ssub.s32 128, 128
      %42 = vsyncadd [#allocation5], %s41
      %s44 = sshll.u32 [#allocation6], 4
      %s45 = int_to_ptr.vmem [resolvable:$true] %s44
      %47 = dma.hbm_to_vmem [thread:$0]  %s2, 128, %s45, [#allocation5]
    $region13: #{encoder_fc_forward.1} parent=1 // pred_fallthru
      _
    // Predicated region
    $region14: #{encoder_fc_forward.1} parent=1 // pred_check
      _
    $region15: #{encoder_fc_forward.1} parent=1 // pred_check_branch
      %49 = sbr.rel (0) target = $region17
    $region16: #{encoder_fc_forward.1} parent=1 // pred_region
      %s51 = ssub.s32 2048, 2048
      %52 = vsyncadd [#allocation8], %s51
      %s53 = sshll.u32 [#allocation7], 4
      %s54 = int_to_ptr.vmem [resolvable:$true] %s53
      %59 = dma.hbm_to_vmem [thread:$0]  %s3, 2048, %s54, [#allocation8], 128, 128, 8
    $region17: #{encoder_fc_forward.1} parent=1 // pred_fallthru
      _
    // Predicated region
    $region18: #{encoder_fc_forward.1} parent=1 // pred_check
      _
    $region19: #{encoder_fc_forward.1} parent=1 // pred_check_branch
      %61 = sbr.rel (0) target = $region21
    $region20: #{encoder_fc_forward.1} parent=1 // pred_region
      %s63 = ssub.s32 128, 128
      %64 = vsyncadd [#allocation8], %s63
      %s66 = sshll.u32 [#allocation9], 4
      %s67 = int_to_ptr.vmem [resolvable:$true] %s66
      %69 = dma.hbm_to_vmem [thread:$0]  %s4, 128, %s67, [#allocation8]
    $region21: #{encoder_fc_forward.1} parent=1 // pred_fallthru
      _
    // Predicated region
    $region22: #{encoder_fc_forward.1} parent=1 // pred_check
      _
    $region23: #{encoder_fc_forward.1} parent=1 // pred_check_branch
      %71 = sbr.rel (0) target = $region25
    $region24: #{encoder_fc_forward.1} parent=1 // pred_region
      %s73 = ssub.s32 2048, 2048
      %74 = vsyncadd [#allocation11], %s73
      %s75 = sshll.u32 [#allocation10], 4
      %s76 = int_to_ptr.vmem [resolvable:$true] %s75
      %81 = dma.hbm_to_vmem [thread:$0]  %s5, 2048, %s76, [#allocation11], 128, 128, 8
    $region25: #{encoder_fc_forward.1} parent=1 // pred_fallthru
      _
    // Predicated region
    $region26: #{encoder_fc_forward.1} parent=1 // pred_check
      _
    $region27: #{encoder_fc_forward.1} parent=1 // pred_check_branch
      %83 = sbr.rel (0) target = $region29
    $region28: #{encoder_fc_forward.1} parent=1 // pred_region
      _
    $region29: #{encoder_fc_forward.1} parent=1 // pred_fallthru
      _
    // Predicated region
    $region30: #{encoder_fc_forward.1} parent=1 // pred_check
      _
    $region31: #{encoder_fc_forward.1} parent=1 // pred_check_branch
      %85 = sbr.rel (0) target = $region33
    $region32: #{encoder_fc_forward.1} parent=1 // pred_region
      %86 = dma.done [#allocation3], 128
    $region33: #{encoder_fc_forward.1} parent=1 // pred_fallthru
      _
    // Predicated region
    $region34: #{encoder_fc_forward.1} parent=1 // pred_check
      _
    $region35: #{encoder_fc_forward.1} parent=1 // pred_check_branch
      %88 = sbr.rel (0) target = $region37
    $region36: #{encoder_fc_forward.1} parent=1 // pred_region
      %89 = dma.done [#allocation5], 512
    $region37: #{encoder_fc_forward.1} parent=1 // pred_fallthru
      _
    // Predicated region
    $region38: #{encoder_fc_forward.1} parent=1 // pred_check
      _
    $region39: #{encoder_fc_forward.1} parent=1 // pred_check_branch
      %91 = sbr.rel (0) target = $region41
    $region40: #{encoder_fc_forward.1} parent=1 // pred_region
      %92 = dma.done [#allocation5], 128
    $region41: #{encoder_fc_forward.1} parent=1 // pred_fallthru
      _
    // Predicated region
    $region42: #{encoder_fc_forward.1} parent=1 // pred_check
      _
    $region43: #{encoder_fc_forward.1} parent=1 // pred_check_branch
      %94 = sbr.rel (0) target = $region45
    $region44: #{encoder_fc_forward.1} parent=1 // pred_region
      %95 = dma.done [#allocation8], 2048
    $region45: #{encoder_fc_forward.1} parent=1 // pred_fallthru
      _
    // Predicated region
    $region46: #{encoder_fc_forward.1} parent=1 // pred_check
      _
    $region47: #{encoder_fc_forward.1} parent=1 // pred_check_branch
      %97 = sbr.rel (0) target = $region49
    $region48: #{encoder_fc_forward.1} parent=1 // pred_region
      %98 = dma.done [#allocation8], 128
    $region49: #{encoder_fc_forward.1} parent=1 // pred_fallthru
      _
    // Predicated region
    $region50: #{encoder_fc_forward.1} parent=1 // pred_check
      _
    $region51: #{encoder_fc_forward.1} parent=1 // pred_check_branch
      %100 = sbr.rel (0) target = $region53
    $region52: #{encoder_fc_forward.1} parent=1 // pred_region
      %101 = dma.done [#allocation11], 2048
    $region53: #{encoder_fc_forward.1} parent=1 // pred_fallthru
      _
    %v102 = vld [vmem:[#allocation2] sm:$0xff]
    %v103 = vld [vmem:[#allocation4] sm:$0xff]
    %v104 = vld [vmem:[#allocation4 + $0x8] sm:$0xff]
    %v105 = vld [vmem:[#allocation4 + $0x10] sm:$0xff]
    %v106 = vld [vmem:[#allocation4 + $0x18] sm:$0xff]
    %v107 = vld [vmem:[#allocation6] sm:$0x1]
    %v108 = vlaneseq
    %v109 = vshrl.u32 %v108, 7
    %v110 = vsub.s32 0, %v109
    %v111 = vrot.slane %v107, %v110
    %vm112 = vcmask 261120
    %v114 = vsel %vm112, %v102, 0
    %116 = vmatprep.subr.mxu0 0.0
    %117 = vmatpush1.msra.mxu0 0.0
    %118 = vmatprep.subr.mxu0 0.0
    %119 = vmatpush1.msra.mxu0 0.0
    %120 = vmatprep.subr.mxu0 0.0
    %121 = vmatpush1.msra.mxu0 0.0
    %122 = vmatprep.subr.mxu0 0.0
    %123 = vmatpush1.msra.mxu0 0.0
    %124 = vmatprep.subr.mxu0 0.0
    %125 = vmatpush1.msra.mxu0 0.0
    %126 = vmatprep.subr.mxu0 0.0
    %127 = vmatpush1.msra.mxu0 0.0
    %128 = vmatprep.subr.mxu0 0.0
    %129 = vmatpush1.msra.mxu0 0.0
    %130 = vmatprep.subr.mxu0 0.0
    %131 = vmatpush1.msra.mxu0 0.0
    %132 = vmatprep.subr.mxu0 0.0
    %133 = vmatpush1.msra.mxu0 0.0
    %134 = vmatprep.subr.mxu0 0.0
    %135 = vmatpush1.msra.mxu0 0.0
    %136 = vmatprep.subr.mxu0 0.0
    %137 = vmatpush1.msra.mxu0 0.0
    %138 = vmatprep.subr.mxu0 0.0
    %139 = vmatpush1.msra.mxu0 0.0
    %140 = vmatprep.subr.mxu0 0.0
    %141 = vmatpush1.msra.mxu0 %v106
    %142 = vmatprep.subr.mxu0 0.0
    %143 = vmatpush1.msra.mxu0 %v105
    %144 = vmatprep.subr.mxu0 0.0
    %145 = vmatpush1.msra.mxu0 %v104
    %146 = vmatprep.subr.mxu0 0.0
    %147 = vmatpush1.msra.mxu0 %v103
    %148 = vmatprep.subr.mxu0 0.0
    %149 = vmatpush2.msra.mxu0 0.0
    %150 = vmatprep.subr.mxu0 0.0
    %151 = vmatpush2.msra.mxu0 0.0
    %152 = vmatprep.subr.mxu0 0.0
    %153 = vmatpush2.msra.mxu0 0.0
    %154 = vmatprep.subr.mxu0 0.0
    %155 = vmatpush2.msra.mxu0 0.0
    %156 = vmatprep.subr.mxu0 0.0
    %157 = vmatpush2.msra.mxu0 0.0
    %158 = vmatprep.subr.mxu0 0.0
    %159 = vmatpush2.msra.mxu0 0.0
    %160 = vmatprep.subr.mxu0 0.0
    %161 = vmatpush2.msra.mxu0 0.0
    %162 = vmatprep.subr.mxu0 0.0
    %163 = vmatpush2.msra.mxu0 0.0
    %164 = vmatprep.subr.mxu0 0.0
    %165 = vmatpush2.msra.mxu0 0.0
    %166 = vmatprep.subr.mxu0 0.0
    %167 = vmatpush2.msra.mxu0 0.0
    %168 = vmatprep.subr.mxu0 0.0
    %169 = vmatpush2.msra.mxu0 0.0
    %170 = vmatprep.subr.mxu0 0.0
    %171 = vmatpush2.msra.mxu0 0.0
    %172 = vmatprep.subr.mxu0 0.0
    %173 = vmatpush2.msra.mxu0 0.0
    %174 = vmatprep.subr.mxu0 0.0
    %175 = vmatpush2.msra.mxu0 0.0
    %176 = vmatprep.subr.mxu0 0.0
    %177 = vmatpush2.msra.mxu0 0.0
    %178 = vmatprep.subr.mxu0 0.0
    %179 = vmatpush2.msra.mxu0 0.0
    %180 = vmatprep.mubr.f32.mxu0 0.0
    %181 = vmatmul.mubr.f32.gmra.mxu0 %v114
    %v182 = vpop.f32.mrf.mxu0
    %v183 = vadd.f32 %v111, %v182
    %v184 = vpop.f32.mrf.mxu0
    %185 = vdwg.mxu0
    %vm186 = vcmp.ge.f32.partialorder %v183, 0.0
    %v187 = vmul.f32 %v183, 0.2
    %v188 = vsel %vm186, %v183, %v187
    %v189 = vrot.slane %v188, 4
    %v190 = vadd.f32 %v188, %v189
    %v191 = vrot.slane %v190, 2
    %v192 = vadd.f32 %v190, %v191
    %v193 = vrot.slane %v192, 1
    %v194 = vadd.f32 %v192, %v193
    %v195 = vmul.f32 %v194, 0.125
    %v196 = vsub.f32 %v188, %v195
    %v197 = vmul.f32 %v196, %v196
    %v198 = vrot.slane %v197, 4
    %v199 = vadd.f32 %v197, %v198
    %v200 = vrot.slane %v199, 2
    %v201 = vadd.f32 %v199, %v200
    %v202 = vrot.slane %v201, 1
    %v203 = vadd.f32 %v201, %v202
    %v204 = vmul.f32 %v203, 0.125
    %v205 = vld [vmem:[#allocation6 + $0x1] sm:$0x1]
    %v206 = vadd.f32 %v204, 1e-05
    %v207 = vrsqrt.pop %v206
    %v208 = vmul.f32 %v205, %v207
    %v209 = vlaneseq
    %v210 = vshrl.u32 %v209, 7
    %v211 = vsub.s32 0, %v210
    %v212 = vrot.slane %v208, %v211
    %v213 = vmul.f32 %v196, %v212
    %v214 = vld [vmem:[#allocation6 + $0x2] sm:$0x1]
    %v215 = vlaneseq
    %v216 = vshrl.u32 %v215, 7
    %v217 = vsub.s32 0, %v216
    %v218 = vrot.slane %v214, %v217
    %v219 = vadd.f32 %v213, %v218
    %v220 = vld [vmem:[#allocation7] sm:$0xff]
    %v221 = vld [vmem:[#allocation7 + $0x8] sm:$0xff]
    %v222 = vld [vmem:[#allocation7 + $0x10] sm:$0xff]
    %v223 = vld [vmem:[#allocation7 + $0x18] sm:$0xff]
    %v224 = vld [vmem:[#allocation7 + $0x20] sm:$0xff]
    %v225 = vld [vmem:[#allocation7 + $0x28] sm:$0xff]
    %v226 = vld [vmem:[#allocation7 + $0x30] sm:$0xff]
    %v227 = vld [vmem:[#allocation7 + $0x38] sm:$0xff]
    %v228 = vld [vmem:[#allocation7 + $0x40] sm:$0xff]
    %v229 = vld [vmem:[#allocation7 + $0x48] sm:$0xff]
    %v230 = vld [vmem:[#allocation7 + $0x50] sm:$0xff]
    %v231 = vld [vmem:[#allocation7 + $0x58] sm:$0xff]
    %v232 = vld [vmem:[#allocation7 + $0x60] sm:$0xff]
    %v233 = vld [vmem:[#allocation7 + $0x68] sm:$0xff]
    %v234 = vld [vmem:[#allocation7 + $0x70] sm:$0xff]
    %v235 = vld [vmem:[#allocation7 + $0x78] sm:$0xff]
    %v236 = vld [vmem:[#allocation9] sm:$0x1]
    %v237 = vlaneseq
    %v238 = vshrl.u32 %v237, 7
    %v239 = vsub.s32 0, %v238
    %v240 = vrot.slane %v236, %v239
    %241 = vmatprep.subr.mxu0 0.0
    %242 = vmatpush1.msra.mxu0 %v235
    %243 = vmatprep.subr.mxu0 0.0
    %244 = vmatpush1.msra.mxu0 %v234
    %245 = vmatprep.subr.mxu0 0.0
    %246 = vmatpush1.msra.mxu0 %v233
    %247 = vmatprep.subr.mxu0 0.0
    %248 = vmatpush1.msra.mxu0 %v232
    %249 = vmatprep.subr.mxu0 0.0
    %250 = vmatpush1.msra.mxu0 %v231
    %251 = vmatprep.subr.mxu0 0.0
    %252 = vmatpush1.msra.mxu0 %v230
    %253 = vmatprep.subr.mxu0 0.0
    %254 = vmatpush1.msra.mxu0 %v229
    %255 = vmatprep.subr.mxu0 0.0
    %256 = vmatpush1.msra.mxu0 %v228
    %257 = vmatprep.subr.mxu0 0.0
    %258 = vmatpush1.msra.mxu0 %v227
    %259 = vmatprep.subr.mxu0 0.0
    %260 = vmatpush1.msra.mxu0 %v226
    %261 = vmatprep.subr.mxu0 0.0
    %262 = vmatpush1.msra.mxu0 %v225
    %263 = vmatprep.subr.mxu0 0.0
    %264 = vmatpush1.msra.mxu0 %v224
    %265 = vmatprep.subr.mxu0 0.0
    %266 = vmatpush1.msra.mxu0 %v223
    %267 = vmatprep.subr.mxu0 0.0
    %268 = vmatpush1.msra.mxu0 %v222
    %269 = vmatprep.subr.mxu0 0.0
    %270 = vmatpush1.msra.mxu0 %v221
    %271 = vmatprep.subr.mxu0 0.0
    %272 = vmatpush1.msra.mxu0 %v220
    %273 = vmatprep.subr.mxu0 0.0
    %274 = vmatpush2.msra.mxu0 0.0
    %275 = vmatprep.subr.mxu0 0.0
    %276 = vmatpush2.msra.mxu0 0.0
    %277 = vmatprep.subr.mxu0 0.0
    %278 = vmatpush2.msra.mxu0 0.0
    %279 = vmatprep.subr.mxu0 0.0
    %280 = vmatpush2.msra.mxu0 0.0
    %281 = vmatprep.subr.mxu0 0.0
    %282 = vmatpush2.msra.mxu0 0.0
    %283 = vmatprep.subr.mxu0 0.0
    %284 = vmatpush2.msra.mxu0 0.0
    %285 = vmatprep.subr.mxu0 0.0
    %286 = vmatpush2.msra.mxu0 0.0
    %287 = vmatprep.subr.mxu0 0.0
    %288 = vmatpush2.msra.mxu0 0.0
    %289 = vmatprep.subr.mxu0 0.0
    %290 = vmatpush2.msra.mxu0 0.0
    %291 = vmatprep.subr.mxu0 0.0
    %292 = vmatpush2.msra.mxu0 0.0
    %293 = vmatprep.subr.mxu0 0.0
    %294 = vmatpush2.msra.mxu0 0.0
    %295 = vmatprep.subr.mxu0 0.0
    %296 = vmatpush2.msra.mxu0 0.0
    %297 = vmatprep.subr.mxu0 0.0
    %298 = vmatpush2.msra.mxu0 0.0
    %299 = vmatprep.subr.mxu0 0.0
    %300 = vmatpush2.msra.mxu0 0.0
    %301 = vmatprep.subr.mxu0 0.0
    %302 = vmatpush2.msra.mxu0 0.0
    %303 = vmatprep.subr.mxu0 0.0
    %304 = vmatpush2.msra.mxu0 0.0
    %305 = vmatprep.mubr.f32.mxu0 0.0
    %306 = vmatmul.mubr.f32.gmra.mxu0 %v219
    %v307 = vpop.f32.mrf.mxu0
    %v308 = vadd.f32 %v240, %v307
    %v309 = vpop.f32.mrf.mxu0
    %310 = vdwg.mxu0
    %vm311 = vcmp.ge.f32.partialorder %v308, 0.0
    %v312 = vmul.f32 %v308, 0.2
    %v313 = vsel %vm311, %v308, %v312
    %v314 = vrot.slane %v313, 4
    %v315 = vadd.f32 %v313, %v314
    %v316 = vrot.slane %v315, 2
    %v317 = vadd.f32 %v315, %v316
    %v318 = vrot.slane %v317, 1
    %v319 = vadd.f32 %v317, %v318
    %v320 = vmul.f32 %v319, 0.125
    %v321 = vsub.f32 %v313, %v320
    %v322 = vmul.f32 %v321, %v321
    %v323 = vrot.slane %v322, 4
    %v324 = vadd.f32 %v322, %v323
    %v325 = vrot.slane %v324, 2
    %v326 = vadd.f32 %v324, %v325
    %v327 = vrot.slane %v326, 1
    %v328 = vadd.f32 %v326, %v327
    %v329 = vmul.f32 %v328, 0.125
    %v330 = vld [vmem:[#allocation9 + $0x1] sm:$0x1]
    %v331 = vadd.f32 %v329, 1e-05
    %v332 = vrsqrt.pop %v331
    %v333 = vmul.f32 %v330, %v332
    %v334 = vlaneseq
    %v335 = vshrl.u32 %v334, 7
    %v336 = vsub.s32 0, %v335
    %v337 = vrot.slane %v333, %v336
    %v338 = vmul.f32 %v321, %v337
    %v339 = vld [vmem:[#allocation9 + $0x2] sm:$0x1]
    %v340 = vlaneseq
    %v341 = vshrl.u32 %v340, 7
    %v342 = vsub.s32 0, %v341
    %v343 = vrot.slane %v339, %v342
    %v344 = vadd.f32 %v338, %v343
    %v345 = vld [vmem:[#allocation10] sm:$0xff]
    %v346 = vld [vmem:[#allocation10 + $0x8] sm:$0xff]
    %v347 = vld [vmem:[#allocation10 + $0x10] sm:$0xff]
    %v348 = vld [vmem:[#allocation10 + $0x18] sm:$0xff]
    %v349 = vld [vmem:[#allocation10 + $0x20] sm:$0xff]
    %v350 = vld [vmem:[#allocation10 + $0x28] sm:$0xff]
    %v351 = vld [vmem:[#allocation10 + $0x30] sm:$0xff]
    %v352 = vld [vmem:[#allocation10 + $0x38] sm:$0xff]
    %v353 = vld [vmem:[#allocation10 + $0x40] sm:$0xff]
    %v354 = vld [vmem:[#allocation10 + $0x48] sm:$0xff]
    %v355 = vld [vmem:[#allocation10 + $0x50] sm:$0xff]
    %v356 = vld [vmem:[#allocation10 + $0x58] sm:$0xff]
    %v357 = vld [vmem:[#allocation10 + $0x60] sm:$0xff]
    %v358 = vld [vmem:[#allocation10 + $0x68] sm:$0xff]
    %v359 = vld [vmem:[#allocation10 + $0x70] sm:$0xff]
    %v360 = vld [vmem:[#allocation10 + $0x78] sm:$0xff]
    %v361 = vld [vmem:[%s6] sm:$0x1]
    %v363 = vlaneseq
    %v364 = vshrl.u32 %v363, 7
    %v365 = vsub.s32 0, %v364
    %v366 = vrot.slane %v361, %v365
    %368 = vmatprep.subr.mxu0 0.0
    %369 = vmatpush1.msra.mxu0 %v360
    %370 = vmatprep.subr.mxu0 0.0
    %371 = vmatpush1.msra.mxu0 %v359
    %372 = vmatprep.subr.mxu0 0.0
    %373 = vmatpush1.msra.mxu0 %v358
    %374 = vmatprep.subr.mxu0 0.0
    %375 = vmatpush1.msra.mxu0 %v357
    %376 = vmatprep.subr.mxu0 0.0
    %377 = vmatpush1.msra.mxu0 %v356
    %378 = vmatprep.subr.mxu0 0.0
    %379 = vmatpush1.msra.mxu0 %v355
    %380 = vmatprep.subr.mxu0 0.0
    %381 = vmatpush1.msra.mxu0 %v354
    %382 = vmatprep.subr.mxu0 0.0
    %383 = vmatpush1.msra.mxu0 %v353
    %384 = vmatprep.subr.mxu0 0.0
    %385 = vmatpush1.msra.mxu0 %v352
    %386 = vmatprep.subr.mxu0 0.0
    %387 = vmatpush1.msra.mxu0 %v351
    %388 = vmatprep.subr.mxu0 0.0
    %389 = vmatpush1.msra.mxu0 %v350
    %390 = vmatprep.subr.mxu0 0.0
    %391 = vmatpush1.msra.mxu0 %v349
    %392 = vmatprep.subr.mxu0 0.0
    %393 = vmatpush1.msra.mxu0 %v348
    %394 = vmatprep.subr.mxu0 0.0
    %395 = vmatpush1.msra.mxu0 %v347
    %396 = vmatprep.subr.mxu0 0.0
    %397 = vmatpush1.msra.mxu0 %v346
    %398 = vmatprep.subr.mxu0 0.0
    %399 = vmatpush1.msra.mxu0 %v345
    %400 = vmatprep.subr.mxu0 0.0
    %401 = vmatpush2.msra.mxu0 0.0
    %402 = vmatprep.subr.mxu0 0.0
    %403 = vmatpush2.msra.mxu0 0.0
    %404 = vmatprep.subr.mxu0 0.0
    %405 = vmatpush2.msra.mxu0 0.0
    %406 = vmatprep.subr.mxu0 0.0
    %407 = vmatpush2.msra.mxu0 0.0
    %408 = vmatprep.subr.mxu0 0.0
    %409 = vmatpush2.msra.mxu0 0.0
    %410 = vmatprep.subr.mxu0 0.0
    %411 = vmatpush2.msra.mxu0 0.0
    %412 = vmatprep.subr.mxu0 0.0
    %413 = vmatpush2.msra.mxu0 0.0
    %414 = vmatprep.subr.mxu0 0.0
    %415 = vmatpush2.msra.mxu0 0.0
    %416 = vmatprep.subr.mxu0 0.0
    %417 = vmatpush2.msra.mxu0 0.0
    %418 = vmatprep.subr.mxu0 0.0
    %419 = vmatpush2.msra.mxu0 0.0
    %420 = vmatprep.subr.mxu0 0.0
    %421 = vmatpush2.msra.mxu0 0.0
    %422 = vmatprep.subr.mxu0 0.0
    %423 = vmatpush2.msra.mxu0 0.0
    %424 = vmatprep.subr.mxu0 0.0
    %425 = vmatpush2.msra.mxu0 0.0
    %426 = vmatprep.subr.mxu0 0.0
    %427 = vmatpush2.msra.mxu0 0.0
    %428 = vmatprep.subr.mxu0 0.0
    %429 = vmatpush2.msra.mxu0 0.0
    %430 = vmatprep.subr.mxu0 0.0
    %431 = vmatpush2.msra.mxu0 0.0
    %432 = vmatprep.mubr.f32.mxu0 0.0
    %433 = vmatmul.mubr.f32.gmra.mxu0 %v344
    %v434 = vpop.f32.mrf.mxu0
    %v435 = vadd.f32 %v366, %v434
    %v436 = vpop.f32.mrf.mxu0
    %437 = vdwg.mxu0
    %438 = vst [vmem:[%s7] sm:$0xff] %v435
    // Predicated region
    $region54: #{encoder_fc_forward.1} parent=1 // pred_check
      _
    $region55: #{encoder_fc_forward.1} parent=1 // pred_check_branch
      %440 = sbr.rel (0) target = $region57
    $region56: #{encoder_fc_forward.1} parent=1 // pred_region
      _
    $region57: #{encoder_fc_forward.1} parent=1 // pred_fallthru
      _
    // Predicated region
    $region58: #{encoder_fc_forward.1} parent=1 // pred_check
      _
    $region59: #{encoder_fc_forward.1} parent=1 // pred_check_branch
      %442 = sbr.rel (0) target = $region61
    $region60: #{encoder_fc_forward.1} parent=1 // pred_region
      _
    $region61: #{encoder_fc_forward.1} parent=1 // pred_fallthru
      _
    %443 = vsyncpa [#allocation3], 1
    %444 = vsyncpa [#allocation5], 1
    %445 = vsyncpa [#allocation8], 1
    %446 = vsyncpa [#allocation11], 1

</llo_original>
